<compile_context>
chip_gen: v7x
topology: tpu7x:2x2x1
jax: 0.10.0
libtpu: 0.0.40
codegen_flags: <defaults>
</compile_context>

<pallas_src>
import functools
import math

import jax
import jax.numpy as jnp
from jax.experimental import pallas as pl
from jax.experimental.pallas import tpu as pltpu


# ---------------------------------------------------------------------------
# Prologue: block mask (max-pool + invert + lane-fold replicate) + global sum.
# ---------------------------------------------------------------------------
def _block_mask_kernel(mpad_ref, bm_ref, sum_ref, *, H, W, block_size, r):
    mpad = mpad_ref[...].astype(jnp.float32)          # (1, H+2p, W+2p), {0,1}

    # Separable stride-1 max pool: W (lane) axis first, then H (sublane) axis.
    # Zero padding == -inf padding because the mask is non-negative.
    # 2*(bs-1) maxes instead of bs^2-1.
    pool_w = mpad[:, :, 0:W]
    for dj in range(1, block_size):
        pool_w = jnp.maximum(pool_w, mpad[:, :, dj:dj + W])   # (1, H+2p, W)
    pooled = pool_w[:, 0:H, :]
    for di in range(1, block_size):
        pooled = jnp.maximum(pooled, pool_w[:, di:di + H, :])  # (1, H, W)
    # (even block_size: keeping only the first HxW outputs is exactly the
    #  reference's [:-1, :-1] crop of the (H+1, W+1) pooled output)

    block_mask = 1.0 - pooled                          # (1, H, W)

    # Replicate r times along a channel-fold axis so the hot path can view the
    # mask lane-densely as (N, 1, r*H*W) with r*H*W a multiple of 128.
    bm_ref[...] = jnp.broadcast_to(block_mask[:, None, :, :], (1, r, H, W))

    # Global sum carried across the N grid steps in a resident (1, 1) output.
    @pl.when(pl.program_id(0) == 0)
    def _():
        sum_ref[...] = jnp.zeros_like(sum_ref)
    sum_ref[...] += jnp.sum(block_mask)


# ---------------------------------------------------------------------------
# Hot path: tiled, lane-dense elementwise apply  x * block_mask * numel/sum.
# ---------------------------------------------------------------------------
def _apply_kernel(sum_ref, x_ref, bm_ref, out_ref, *, numel):
    # sum_ref: (1,1) f32 in SMEM; bm_ref: (1,1,L); x_ref/out_ref: (1,TC,L).
    scale = numel / sum_ref[0, 0]   # inf when everything dropped == PyTorch ref
    out_ref[...] = (x_ref[...] * (bm_ref[...] * scale)).astype(out_ref.dtype)


# ---------------------------------------------------------------------------
# Budget / tiling helpers.
# ---------------------------------------------------------------------------
def _vmem_budgets():
    """(vmem_limit_bytes, x/out-block budget) derived per TPU generation."""
    try:
        cap = pltpu.get_tpu_info().vmem_capacity_bytes
    except Exception:
        cap = 64 * 1024 * 1024                 # conservative (v7x-sized) fallback
    vmem_limit = min((cap * 3) // 4, 64 * 1024 * 1024)   # 48 MiB v7x, 64 MiB v5e/v6e
    block_budget = (vmem_limit * 7) // 10                 # ~70% for x/out blocks
    return int(vmem_limit), int(block_budget)


def _choose_channel_tile(C, lane_len, itemsize, *, budget_bytes, n_outer,
                         min_total_steps=8, min_block_bytes=512 * 1024):
    """Channel tile for the apply kernel.

    - keeps the 4 double-buffered (in + out) x blocks within `budget_bytes`,
    - tile is a multiple of 8 (or the full C extent), any C handled via cdiv,
    - prefers >= `min_total_steps` grid steps (feeds both v7x TensorCores) as
      long as each x block stays >= `min_block_bytes`, so it is harmless on
      the single-TensorCore v5e/v6e.
    """
    per_channel = 4 * lane_len * itemsize       # in + out blocks, 2 buffers each
    max_tc = max(1, budget_bytes // per_channel)
    if max_tc >= C:
        tc = C
    elif max_tc >= 8:
        tc = (max_tc // 8) * 8
    else:
        tc = min(8, C)   # budget overshoot only for absurdly large lane_len

    if C > 8:
        floor_tc = max(8, ((min_block_bytes // (lane_len * itemsize)) // 8) * 8)
        want_tiles = -(-min_total_steps // max(1, n_outer))   # cdiv
        cand = -(-C // want_tiles)                            # cdiv
        cand = max(8, ((cand + 7) // 8) * 8)
        cand = max(cand, floor_tc)
        if cand < tc:
            tc = cand
    return tc


def _lane_fold_factor(HW, C):
    """Smallest r with (r*HW) % 128 == 0 and C % r == 0 (lane-dense view)."""
    r = 128 // math.gcd(HW, 128)
    if r > 1 and C % r == 0:
        return r
    # TODO(synk): when HW % 128 != 0 and C is not divisible by r the hot-path
    # stores stay lane-masked; a padded-lane layout could recover that too.
    return 1


# ---------------------------------------------------------------------------
# Public wrapper.
# ---------------------------------------------------------------------------
def dropblock2d(x, key, *, drop_prob, block_size, training=True,
                block_budget_bytes=None):
    """Pallas implementation of DropBlock2D.forward.  x: (N, C, H, W)."""
    assert x.ndim == 4, "Expected input with 4 dimensions (N, C, H, W)"
    if (not training) or drop_prob == 0.0:
        return x

    N, C, H, W = x.shape
    HW = H * W
    gamma = drop_prob / (block_size ** 2)
    pad = block_size // 2

    vmem_limit, budget = _vmem_budgets()
    if block_budget_bytes is not None:       # test hook: force small tiles
        budget = block_budget_bytes

    # Bernoulli seed mask (N, H, W) bf16 {0,1}; tiny vs x (no C dimension).
    # TODO(synk): torch.rand's bit stream cannot be reproduced; the seed mask
    # could also be drawn in-kernel (pltpu.prng_seed / prng_random_bits) and
    # padded in-kernel to drop this small HBM round trip entirely.
    mask = (jax.random.uniform(key, (N, H, W)) < gamma).astype(jnp.bfloat16)
    mask_padded = jnp.pad(mask, ((0, 0), (pad, pad), (pad, pad)))
    Hp, Wp = H + 2 * pad, W + 2 * pad

    r = _lane_fold_factor(HW, C)

    # --- prologue: gridded over N, small per-step footprint, global sum ---
    bm, bm_sum = pl.pallas_call(
        functools.partial(_block_mask_kernel, H=H, W=W,
                          block_size=block_size, r=r),
        out_shape=(jax.ShapeDtypeStruct((N, r, H, W), jnp.float32),
                   jax.ShapeDtypeStruct((1, 1), jnp.float32)),
        grid=(N,),
        in_specs=[pl.BlockSpec((1, Hp, Wp), lambda n: (n, 0, 0))],
        out_specs=(pl.BlockSpec((1, r, H, W), lambda n: (n, 0, 0, 0)),
                   pl.BlockSpec((1, 1), lambda n: (0, 0))),
        compiler_params=pltpu.CompilerParams(
            dimension_semantics=("arbitrary",),   # sum accumulator needs order
            vmem_limit_bytes=vmem_limit,
        ),
    )(mask_padded)

    # --- hot path: lane-dense tiled elementwise apply over (N, C-tiles) ---
    Cp, L = C // r, r * HW
    x3 = x.reshape(N, Cp, L)          # lane-dense view (L % 128 == 0 when r>1)
    bm3 = bm.reshape(N, 1, L)         # r replicated copies of the HW mask

    tc = _choose_channel_tile(Cp, L, jnp.dtype(x.dtype).itemsize,
                              budget_bytes=budget, n_outer=N)
    grid = (N, pl.cdiv(Cp, tc))       # c innermost -> bm block never re-DMA'd

    # TODO(synk): if a v7x profile shows exposed DMA at block handoff, add
    # pipeline_mode=pl.Buffered(3) to the x/out BlockSpecs.
    out3 = pl.pallas_call(
        functools.partial(_apply_kernel, numel=float(N * H * W)),
        out_shape=jax.ShapeDtypeStruct((N, Cp, L), x.dtype),
        grid=grid,
        in_specs=[
            pl.BlockSpec(memory_space=pltpu.MemorySpace.SMEM),   # bm_sum (1,1)
            pl.BlockSpec((1, tc, L), lambda n, c: (n, c, 0)),    # x tile
            pl.BlockSpec((1, 1, L), lambda n, c: (n, 0, 0)),     # mask (c-const)
        ],
        out_specs=pl.BlockSpec((1, tc, L), lambda n, c: (n, c, 0)),
        compiler_params=pltpu.CompilerParams(
            dimension_semantics=("parallel", "parallel"),
            vmem_limit_bytes=vmem_limit,
        ),
    )(bm_sum, x3, bm3)

    return out3.reshape(N, C, H, W)


# ---------------------------------------------------------------------------
# Pure-JAX reference mirroring the PyTorch forward (same mask RNG).
# ---------------------------------------------------------------------------
def _dropblock_reference(x, key, *, drop_prob, block_size):
    N, C, H, W = x.shape
    gamma = drop_prob / (block_size ** 2)
    pad = block_size // 2
    mask = (jax.random.uniform(key, (N, H, W)) < gamma).astype(jnp.float32)
    pooled = jax.lax.reduce_window(
        mask, -jnp.inf, jax.lax.max,
        window_dimensions=(1, block_size, block_size),
        window_strides=(1, 1, 1),
        padding=((0, 0), (pad, pad), (pad, pad)),
    )
    if block_size % 2 == 0:
        pooled = pooled[:, :-1, :-1]
    block_mask = 1.0 - pooled
    out = x * block_mask[:, None, :, :]
    return out * block_mask.size / jnp.sum(block_mask)


if __name__ == "__main__":
    key = jax.random.PRNGKey(0)
    kx, kmask, kmask_even, kx2, kmask2, kx3, kmask3 = jax.random.split(key, 7)

    N, C, H, W = 2, 4, 16, 16
    drop_prob = 0.3

    x = jax.random.normal(kx, (N, C, H, W), dtype=jnp.float32)

    # odd block size
    out = dropblock2d(x, kmask, drop_prob=drop_prob, block_size=3,
                      training=True)
    out = jax.block_until_ready(out)
    ref = _dropblock_reference(x, kmask, drop_prob=drop_prob, block_size=3)
    assert out.shape == x.shape and out.dtype == x.dtype
    assert jnp.allclose(out, ref, atol=1e-5, rtol=1e-5), "mismatch (bs=3)"

    # even block size (exercises the implicit [:-1, :-1] crop)
    out_e = dropblock2d(x, kmask_even, drop_prob=drop_prob, block_size=4,
                        training=True)
    out_e = jax.block_until_ready(out_e)
    ref_e = _dropblock_reference(x, kmask_even, drop_prob=drop_prob,
                                 block_size=4)
    assert jnp.allclose(out_e, ref_e, atol=1e-5, rtol=1e-5), "mismatch (bs=4)"

    # non-128-multiple spatial size -> exercises the lane-fold (r > 1) path
    x2 = jax.random.normal(kx2, (2, 128, 7, 7), dtype=jnp.float32)
    out2 = dropblock2d(x2, kmask2, drop_prob=drop_prob, block_size=3,
                       training=True)
    out2 = jax.block_until_ready(out2)
    ref2 = _dropblock_reference(x2, kmask2, drop_prob=drop_prob, block_size=3)
    assert jnp.allclose(out2, ref2, atol=1e-5, rtol=1e-5), "mismatch (lane-fold)"

    # forced small tile budget -> exercises the cdiv / ragged last-tile path
    x3 = jax.random.normal(kx3, (1, 40, 16, 16), dtype=jnp.float32)
    out3 = dropblock2d(x3, kmask3, drop_prob=drop_prob, block_size=3,
                       training=True, block_budget_bytes=64 * 1024)
    out3 = jax.block_until_ready(out3)
    ref3 = _dropblock_reference(x3, kmask3, drop_prob=drop_prob, block_size=3)
    assert jnp.allclose(out3, ref3, atol=1e-5, rtol=1e-5), "mismatch (ragged)"

    # eval mode / drop_prob == 0 passthrough
    passthrough = dropblock2d(x, kmask, drop_prob=drop_prob, block_size=3,
                              training=False)
    assert jnp.array_equal(passthrough, x)
    passthrough0 = dropblock2d(x, kmask, drop_prob=0.0, block_size=3,
                               training=True)
    assert jnp.array_equal(passthrough0, x)

    print("KERNEL_OK")
</pallas_src>

<mosaic_0001>
module attributes {stable_mosaic.version = 11 : i64} {
  func.func @_block_mask_kernel(%arg0: i32, %arg1: memref<1x18x18xbf16, #tpu.memory_space<vmem>>, %arg2: memref<1x1x16x16xf32, #tpu.memory_space<vmem>>, %arg3: memref<1x1xf32, #tpu.memory_space<vmem>>) attributes {dimension_semantics = [#tpu.dimension_semantics<arbitrary>], iteration_bounds = array<i64: 2>, scalar_prefetch = 0 : i64, scratch_operands = 0 : i64, tpu.core_type = #tpu.core_type<tc>, window_params = [{transform_indices = @transform_0, window_bounds = array<i64: 1, 18, 18>}, {transform_indices = @transform_1, window_bounds = array<i64: 1, 1, 16, 16>}, {pipeline_mode = #tpu.pipeline_mode<synchronous>, transform_indices = @transform_2, window_bounds = array<i64: 1, 1>}]} {
    %c0 = arith.constant 0 : index
    %c0_0 = arith.constant 0 : index
    %c0_1 = arith.constant 0 : index
    %0 = vector.load %arg1[%c0, %c0_0, %c0_1] : memref<1x18x18xbf16, #tpu.memory_space<vmem>>, vector<1x18x18xbf16>
    %1 = arith.extf %0 : vector<1x18x18xbf16> to vector<1x18x18xf32>
    %2 = vector.extract_strided_slice %1 {offsets = [0, 0, 0], sizes = [1, 18, 16], strides = [1, 1, 1]} : vector<1x18x18xf32> to vector<1x18x16xf32>
    %3 = vector.extract_strided_slice %1 {offsets = [0, 0, 1], sizes = [1, 18, 16], strides = [1, 1, 1]} : vector<1x18x18xf32> to vector<1x18x16xf32>
    %4 = arith.maximumf %2, %3 : vector<1x18x16xf32>
    %5 = vector.extract_strided_slice %1 {offsets = [0, 0, 2], sizes = [1, 18, 16], strides = [1, 1, 1]} : vector<1x18x18xf32> to vector<1x18x16xf32>
    %6 = arith.maximumf %4, %5 : vector<1x18x16xf32>
    %7 = vector.extract_strided_slice %6 {offsets = [0, 0, 0], sizes = [1, 16, 16], strides = [1, 1, 1]} : vector<1x18x16xf32> to vector<1x16x16xf32>
    %8 = vector.extract_strided_slice %6 {offsets = [0, 1, 0], sizes = [1, 16, 16], strides = [1, 1, 1]} : vector<1x18x16xf32> to vector<1x16x16xf32>
    %9 = arith.maximumf %7, %8 : vector<1x16x16xf32>
    %10 = vector.extract_strided_slice %6 {offsets = [0, 2, 0], sizes = [1, 16, 16], strides = [1, 1, 1]} : vector<1x18x16xf32> to vector<1x16x16xf32>
    %11 = arith.maximumf %9, %10 : vector<1x16x16xf32>
    %cst = arith.constant 1.000000e+00 : f32
    %12 = vector.broadcast %cst : f32 to vector<1x16x16xf32>
    %13 = arith.subf %12, %11 : vector<1x16x16xf32>
    %14 = vector.shape_cast %13 : vector<1x16x16xf32> to vector<1x1x16x16xf32>
    %c0_2 = arith.constant 0 : index
    %c0_3 = arith.constant 0 : index
    %c0_4 = arith.constant 0 : index
    %c0_5 = arith.constant 0 : index
    %15 = vector.load %arg2[%c0_2, %c0_3, %c0_4, %c0_5] : memref<1x1x16x16xf32, #tpu.memory_space<vmem>>, vector<1x1x16x16xf32>
    tpu.vector_store %arg2[%c0_2, %c0_3, %c0_4, %c0_5], %14 {strides = array<i32>} : memref<1x1x16x16xf32, #tpu.memory_space<vmem>>, vector<1x1x16x16xf32>,
    %c0_i32 = arith.constant 0 : i32
    %16 = arith.cmpi eq, %arg0, %c0_i32 : i32
    %17 = arith.extui %16 : i1 to i32
    %c0_i32_6 = arith.constant 0 : i32
    %18 = arith.cmpi ne, %17, %c0_i32_6 : i32
    scf.if %18 {
      %cst_12 = arith.constant 0.000000e+00 : f32
      %27 = vector.broadcast %cst_12 : f32 to vector<1x1xf32>
      %c0_13 = arith.constant 0 : index
      %c0_14 = arith.constant 0 : index
      %28 = vector.load %arg3[%c0_13, %c0_14] : memref<1x1xf32, #tpu.memory_space<vmem>>, vector<1x1xf32>
      tpu.vector_store %arg3[%c0_13, %c0_14], %27 {strides = array<i32>} : memref<1x1xf32, #tpu.memory_space<vmem>>, vector<1x1xf32>,
    } else {
    }
    %c0_7 = arith.constant 0 : index
    %c0_8 = arith.constant 0 : index
    %19 = vector.load %arg3[%c0_7, %c0_8] : memref<1x1xf32, #tpu.memory_space<vmem>>, vector<1x1xf32>
    %20 = vector.shape_cast %13 : vector<1x16x16xf32> to vector<1x1x16x16xf32>
    %cst_9 = arith.constant dense<0.000000e+00> : vector<1xf32>
    %21 = vector.multi_reduction <add>, %20, %cst_9 [1, 2, 3] : vector<1x1x16x16xf32> to vector<1xf32>
    %22 = vector.shape_cast %21 : vector<1xf32> to vector<1x1x1x1xf32>
    %23 = vector.extract %22[0, 0, 0, 0] : f32 from vector<1x1x1x1xf32>
    %24 = vector.broadcast %23 : f32 to vector<1x1xf32>
    %25 = arith.addf %19, %24 : vector<1x1xf32>
    %c0_10 = arith.constant 0 : index
    %c0_11 = arith.constant 0 : index
    %26 = vector.load %arg3[%c0_10, %c0_11] : memref<1x1xf32, #tpu.memory_space<vmem>>, vector<1x1xf32>
    tpu.vector_store %arg3[%c0_10, %c0_11], %25 {strides = array<i32>} : memref<1x1xf32, #tpu.memory_space<vmem>>, vector<1x1xf32>,
    return
  }
  func.func @transform_0(%arg0: i32) -> (i32, i32, i32) {
    %c0_i32 = arith.constant 0 : i32
    %c0_i32_0 = arith.constant 0 : i32
    %c0_i32_1 = arith.constant 0 : i32
    return %arg0, %c0_i32, %c0_i32_0 : i32, i32, i32
  }
  func.func @transform_1(%arg0: i32) -> (i32, i32, i32, i32) {
    %c0_i32 = arith.constant 0 : i32
    %c0_i32_0 = arith.constant 0 : i32
    %c0_i32_1 = arith.constant 0 : i32
    %c0_i32_2 = arith.constant 0 : i32
    return %arg0, %c0_i32, %c0_i32_0, %c0_i32_1 : i32, i32, i32, i32
  }
  func.func @transform_2(%arg0: i32) -> (i32, i32) {
    %c0_i32 = arith.constant 0 : i32
    %c0_i32_0 = arith.constant 0 : i32
    %c0_i32_1 = arith.constant 0 : i32
    return %c0_i32, %c0_i32_0 : i32, i32
  }
}

</mosaic_0001>

<llo_original>
// kernel: tpu_custom_call.1
$region0: #{tpu_custom_call.1}
  #allocation0 [shape = 'u32[]', space=smem, size = 0x4, offset = 0x4, fixed_abs, tag = 'smem constant byte address 0x4 - core index']
  #allocation1 [shape = 'u32[144,128]{1,0:T(1,128)}', space=vmem, size = 0x12000, scoped, tag = 'internal scratch']
  %s0 = inlined_call_operand.vmem [shape: bf16[2,18,18], index: 0, kind: input, shape index: {}]
  %s1 = inlined_call_operand.hbm [shape: f32[2,1,16,16], index: 1, kind: output, shape index: {0}]
  %s2 = inlined_call_operand.hbm [shape: f32[1,1], index: 2, kind: output, shape index: {1}]
  %3 = xla_tuple %s1, %s2
  %s4 = sld [smem:[#allocation0]]
  $region49: #{tpu_custom_call.1} parent=0
    _
  %s6 = ssub.s32 1, %s4
  %s7 = scalar_select 0, %s6, %s4
  $region1: #{tpu_custom_call.1} parent=0
    #allocation2 [shape = 'u8[16384]{0}', space=vmem, size = 0x4000, scoped, tag = 'output window, operand 0']
    #allocation3 [shape = 's32[2]{0}', space=sflag, size = 0x8, scoped, tag = 'scoped memory for tpu_custom_call.1']
    #allocation4 [shape = 'u8[512]{0}', space=vmem, size = 0x400, scoped, tag = 'output window, operand 1, single buffered']
    #allocation5 [shape = 's32[1]{0}', space=sflag, size = 0x4, scoped, tag = 'scoped memory for tpu_custom_call.1']
    %8 = vsyncpa [#allocation3], 0
    %s9 = scalar_lea.sflag [#allocation3], 1
    %10 = vsyncpa %s9, 0
    %11 = vsyncpa [#allocation5], 0
    loop: start=0, step=1, limit=4
    $region2: #{tpu_custom_call.1} parent=1 // loop_pre_header
      _
    $region3: #{tpu_custom_call.1} parent=1 // loop_header
      %s13 = sphi 0, %s17
      %p14 = scmp.ge.s32.totalorder %s13, 4
      %s23 = sphi 0, %s25
      %s26 = sphi 0, %s23
      %s27 = sphi 0, %s26
      %s43 = sphi 0, %s27
      %s49 = sphi 0, %s51
      %s52 = sphi 0, %s49
      %s53 = sphi 0, %s52
      %s69 = sphi 0, %s53
      %s73 = sphi 0, %s73
      %s75 = sphi 0, %s73
      %s76 = sphi 0, %s75
      %s90 = sphi 0, %s76
    $region4: #{tpu_custom_call.1} parent=1 // loop_header_branch
      %16 = sbr.rel (%p14) target = $region8
    $region5: #{tpu_custom_call.1} parent=1 // loop_body
      %s18 = ssub.s32 %s13, 1
      %s19 = ssub.s32 %s13, 2
      %s20 = sadd.s32 %s13, 1
      %s21 = ssub.s32 %s13, %s20
      %p22 = scmp.eq.s32.totalorder %s21, 0
      %s24 = sadd.s32 %s23, 1
      %s25 = scalar_select %p22, %s23, %s24
      %p28 = pneg %p22
      %p29 = scmp.eq.s32.totalorder %s13, 1
      %p30 = por %p28, %p29
      %p31 = scmp.ne.s32.totalorder %s23, %s26
      %p32 = scmp.eq.s32.totalorder %s13, 0
      %p33 = por %p31, %p32
      %p34 = scmp.ne.s32.totalorder %s23, %s26
      %p35 = scmp.eq.s32.totalorder %s18, 1
      %p36 = por %p34, %p35
      %p37 = scmp.ne.s32.totalorder %s26, %s27
      %p38 = scmp.eq.s32.totalorder %s18, 0
      %p39 = por %p37, %p38
      %p40 = scmp.ne.s32.totalorder %s26, %s27
      %p41 = scmp.eq.s32.totalorder %s19, 1
      %p42 = por %p40, %p41
      %p44 = scmp.ne.s32.totalorder %s27, %s43
      %p45 = scmp.eq.s32.totalorder %s19, 0
      %p46 = por %p44, %p45
      %s47 = ssub.s32 %s13, %s20
      %p48 = scmp.eq.s32.totalorder %s47, 0
      %s50 = sadd.s32 %s49, 1
      %s51 = scalar_select %p48, %s49, %s50
      %p54 = pneg %p48
      %p55 = scmp.eq.s32.totalorder %s13, 1
      %p56 = por %p54, %p55
      %p57 = scmp.ne.s32.totalorder %s49, %s52
      %p58 = scmp.eq.s32.totalorder %s13, 0
      %p59 = por %p57, %p58
      %p60 = scmp.ne.s32.totalorder %s49, %s52
      %p61 = scmp.eq.s32.totalorder %s18, 1
      %p62 = por %p60, %p61
      %p63 = scmp.ne.s32.totalorder %s52, %s53
      %p64 = scmp.eq.s32.totalorder %s18, 0
      %p65 = por %p63, %p64
      %p66 = scmp.ne.s32.totalorder %s52, %s53
      %p67 = scmp.eq.s32.totalorder %s19, 1
      %p68 = por %p66, %p67
      %p70 = scmp.ne.s32.totalorder %s53, %s69
      %p71 = scmp.eq.s32.totalorder %s19, 0
      %p72 = por %p70, %p71
      %s74 = sadd.s32 %s73, 1
      %p77 = scmp.eq.s32.totalorder %s13, 1
      %p78 = scmp.ne.s32.totalorder %s73, %s75
      %p79 = scmp.eq.s32.totalorder %s13, 0
      %p80 = por %p78, %p79
      %p81 = scmp.ne.s32.totalorder %s73, %s75
      %p82 = scmp.eq.s32.totalorder %s18, 1
      %p83 = por %p81, %p82
      %p84 = scmp.ne.s32.totalorder %s75, %s76
      %p85 = scmp.eq.s32.totalorder %s18, 0
      %p86 = por %p84, %p85
      %p87 = scmp.ne.s32.totalorder %s75, %s76
      %p88 = scmp.eq.s32.totalorder %s19, 1
      %p89 = por %p87, %p88
      %p91 = scmp.ne.s32.totalorder %s76, %s90
      %p92 = scmp.eq.s32.totalorder %s19, 0
      %p93 = por %p91, %p92
      %p94 = scmp.le.s32.totalorder 1, %s13
      %p95 = scmp.lt.s32.totalorder %s13, 3
      %p96 = pnand %p94, %p95
      %p97 = pneg %p96
      // Predicated region
      $region9: #{tpu_custom_call.1} parent=5 // pred_check
        _
      $region10: #{tpu_custom_call.1} parent=5 // pred_check_branch
        %99 = sbr.rel (%p96) target = $region12
      $region11: #{tpu_custom_call.1} parent=5 // pred_region
        %s100 = ssub.s32 %s13, 1
      $region12: #{tpu_custom_call.1} parent=5 // pred_fallthru
        _
      %p101 = scmp.lt.s32.totalorder %s13, 2
      // Predicated region
      $region13: #{tpu_custom_call.1} parent=5 // pred_check
        %p102 = pneg %p101
      $region14: #{tpu_custom_call.1} parent=5 // pred_check_branch
        %104 = sbr.rel (%p102) target = $region16
      $region15: #{tpu_custom_call.1} parent=5 // pred_region
        // Predicated region
        $region17: #{tpu_custom_call.1} parent=15 // pred_check
          %p105 = pneg %p33
        $region18: #{tpu_custom_call.1} parent=15 // pred_check_branch
          %107 = sbr.rel (%p105) target = $region20
        $region19: #{tpu_custom_call.1} parent=15 // pred_region
          %p108 = scmp.lt.s32.totalorder %s13, 1
          %s109 = scalar_select %p108, %s13, 1
          %s110 = smul.addr %s109, 3
          %s111 = smul.addr %s110, 4
          %s112 = scalar_lea.vmem %s0, %s111
        $region20: #{tpu_custom_call.1} parent=15 // pred_fallthru
          _
      $region16: #{tpu_custom_call.1} parent=5 // pred_fallthru
        _
      %p113 = scmp.le.s32.totalorder 1, %s13
      %p114 = scmp.lt.s32.totalorder %s13, 3
      %p115 = pnand %p113, %p114
      %p116 = pneg %p115
      // Predicated region
      $region21: #{tpu_custom_call.1} parent=5 // pred_check
        _
      $region22: #{tpu_custom_call.1} parent=5 // pred_check_branch
        %118 = sbr.rel (%p115) target = $region24
      $region23: #{tpu_custom_call.1} parent=5 // pred_region
        %s119 = ssub.s32 %s13, 1
        %p120 = scmp.lt.s32.totalorder %s18, 1
        %s121 = scalar_select %p120, %s18, 1
        %s122 = smul.addr %s121, 3
        %s123 = smul.addr %s122, 4
        %s124 = scalar_lea.vmem %s0, %s123
        %p125 = pneg %p39
        %p126 = pneg %p36
        %p127 = pneg %p65
        %p128 = pneg %p62
        %s129 = sand.u32 %s52, 1
        %s130 = scalar_lea.sflag [#allocation3], %s129
        %s131 = sand.u32 %s52, 1
        %s132 = smul.addr %s131, 16
        %s133 = scalar_lea.vmem [#allocation2], %s132
        %p134 = pneg %p86
        %p135 = pneg %p83
        %p136 = scmp.lt.s32.totalorder %s18, 1
        %s137 = scalar_select %p136, %s18, 1
        %s138 = smul.addr %s137, 3
        %s139 = smul.addr %s138, 4
        %s140 = scalar_lea.vmem %s0, %s139
        %v141 = vld [vmem:[%s140] sm:$0xf]
        %v142 = vld [vmem:[%s140 + $0x4] sm:$0xf]
        %v143 = vld [vmem:[%s140 + $0x8] sm:$0x1]
        %v144 = vunpack.c.l.bf16 %v141
        %v145 = vunpack.c.l.bf16 %v142
        %v146 = vunpack.c.l.bf16 %v143
        %150 = vrot.lane.b32.xlu0 %v144, 127
        %v151 = vpop.permute.xlu0 %150
        %152 = vrot.lane.b32.xlu0 %v145, 127
        %v153 = vpop.permute.xlu0 %152
        %154 = vrot.lane.b32.xlu0 %v146, 127
        %v155 = vpop.permute.xlu0 %154
        %v159 = vmax.f32 %v144, %v151
        %v160 = vmax.f32 %v145, %v153
        %v161 = vmax.f32 %v146, %v155
        %162 = vrot.lane.b32.xlu0 %v144, 126
        %v163 = vpop.permute.xlu0 %162
        %164 = vrot.lane.b32.xlu0 %v145, 126
        %v165 = vpop.permute.xlu0 %164
        %166 = vrot.lane.b32.xlu0 %v146, 126
        %v167 = vpop.permute.xlu0 %166
        %v171 = vmax.f32 %v159, %v163
        %v172 = vmax.f32 %v160, %v165
        %v173 = vmax.f32 %v161, %v167
        %vm177 = vcmask 1046528
        %v178 = vrot.slane %v171, 1
        %v179 = vrot.slane %v172, 1
        %v180 = vsel %vm177, %v178, %v179
        %v181 = vrot.slane %v173, 1
        %v182 = vsel %vm177, %v179, %v181
        %v185 = vmax.f32 %v171, %v180
        %v186 = vmax.f32 %v172, %v182
        %vm187 = vcmask 1045504
        %v188 = vrot.slane %v171, 2
        %v189 = vrot.slane %v172, 2
        %v190 = vsel %vm187, %v188, %v189
        %v191 = vrot.slane %v173, 2
        %v192 = vsel %vm187, %v189, %v191
        %v195 = vmax.f32 %v185, %v190
        %v196 = vmax.f32 %v186, %v192
        %v197 = vsub.f32 1.0, %v195
        %v198 = vsub.f32 1.0, %v196
        %vm199 = vcmask 130048
        %200 = vst.msk [vmem:[%s133] sm:$0xff] %vm199, %v197
        %201 = vst.msk [vmem:[%s133 + $0x8] sm:$0xff] %vm199, %v198
        %p202 = scmp.eq.s32.totalorder %s18, 0
        // Predicated region
        $region25: #{tpu_custom_call.1} parent=23 // pred_check
          %p203 = pneg %p202
        $region26: #{tpu_custom_call.1} parent=23 // pred_check_branch
          %205 = sbr.rel (%p203) target = $region28
        $region27: #{tpu_custom_call.1} parent=23 // pred_region
          %vm206 = vcmask 0
          %207 = vst.msk [vmem:[#allocation4] sm:$0x1] %vm206, 0.0
        $region28: #{tpu_custom_call.1} parent=23 // pred_fallthru
          _
        %v208 = vld [vmem:[#allocation4] sm:$0x1]
        %v209 = vsel %vm199, %v197, 0.0
        %v210 = vsel %vm199, %v198, 0.0
        %v211 = vadd.f32 %v209, %v210
        %212 = vadd.xlane.f32.xlu0 %v211
        %v213 = vpop.xlane.xlu0 %212
        %v214 = vrot.slane %v213, 4
        %v215 = vadd.f32 %v213, %v214
        %v216 = vrot.slane %v215, 2
        %v217 = vadd.f32 %v215, %v216
        %v218 = vrot.slane %v217, 1
        %v219 = vadd.f32 %v217, %v218
        %s220 = vtos %v219
        %v221 = vstv %s220
        %v222 = vadd.f32 %v208, %v221
        %vm223 = vcmask 0
        %224 = vst.msk [vmem:[#allocation4] sm:$0x1] %vm223, %v222
        %s225 = sand.u32 %s52, 1
        %s226 = scalar_lea.sflag [#allocation3], %s225
        %s227 = sand.u32 %s52, 1
        %s228 = smul.addr %s227, 16
        %s229 = scalar_lea.vmem [#allocation2], %s228
        // Predicated region
        $region29: #{tpu_custom_call.1} parent=23 // pred_check
          %p230 = pneg %p62
        $region30: #{tpu_custom_call.1} parent=23 // pred_check_branch
          %232 = sbr.rel (%p230) target = $region32
        $region31: #{tpu_custom_call.1} parent=23 // pred_region
          %s234 = ssub.s32 256, 256
          %235 = vsyncadd %s226, %s234
          %s236 = smul.addr %s18, 2
          %s237 = smul.addr %s236, 128
          %s238 = scalar_lea.hbm %s1, %s237
          %s239 = sshll.u32 %s229, 4
          %s240 = int_to_ptr.vmem [resolvable:$true] %s239
          %245 = dma.vmem_to_hbm [thread:$0]  %s240, 256, %s238, %s226, 128, 128, 8
        $region32: #{tpu_custom_call.1} parent=23 // pred_fallthru
          _
        // Predicated region
        $region33: #{tpu_custom_call.1} parent=23 // pred_check
          %p246 = pneg %p83
        $region34: #{tpu_custom_call.1} parent=23 // pred_check_branch
          %248 = sbr.rel (%p246) target = $region36
        $region35: #{tpu_custom_call.1} parent=23 // pred_region
          %s250 = ssub.s32 16, 16
          %251 = vsyncadd [#allocation5], %s250
          %s253 = sshll.u32 [#allocation4], 4
          %s254 = int_to_ptr.vmem [resolvable:$true] %s253
          %256 = dma.vmem_to_hbm [thread:$0]  %s254, 16, %s2, [#allocation5]
        $region36: #{tpu_custom_call.1} parent=23 // pred_fallthru
          _
        // Predicated region
        $region37: #{tpu_custom_call.1} parent=23 // pred_check
          %p257 = pneg %p83
        $region38: #{tpu_custom_call.1} parent=23 // pred_check_branch
          %259 = sbr.rel (%p257) target = $region40
        $region39: #{tpu_custom_call.1} parent=23 // pred_region
          %260 = dma.done [#allocation5], 16
        $region40: #{tpu_custom_call.1} parent=23 // pred_fallthru
          _
      $region24: #{tpu_custom_call.1} parent=5 // pred_fallthru
        _
      %p261 = scmp.le.s32.totalorder 2, %s13
      // Predicated region
      $region41: #{tpu_custom_call.1} parent=5 // pred_check
        %p262 = pneg %p261
      $region42: #{tpu_custom_call.1} parent=5 // pred_check_branch
        %264 = sbr.rel (%p262) target = $region44
      $region43: #{tpu_custom_call.1} parent=5 // pred_region
        %s265 = ssub.s32 %s13, 2
        // Predicated region
        $region45: #{tpu_custom_call.1} parent=43 // pred_check
          %p266 = pneg %p68
        $region46: #{tpu_custom_call.1} parent=43 // pred_check_branch
          %268 = sbr.rel (%p266) target = $region48
        $region47: #{tpu_custom_call.1} parent=43 // pred_region
          %s269 = sand.u32 %s53, 1
          %s270 = scalar_lea.sflag [#allocation3], %s269
          %s271 = sand.u32 %s53, 1
          %s272 = smul.addr %s271, 16
          %s273 = scalar_lea.vmem [#allocation2], %s272
          %274 = dma.done %s270, 256
        $region48: #{tpu_custom_call.1} parent=43 // pred_fallthru
          _
      $region44: #{tpu_custom_call.1} parent=5 // pred_fallthru
        _
    $region6: #{tpu_custom_call.1} parent=1 // loop_footer
      %s17 = sadd.s32 1, %s13
    $region7: #{tpu_custom_call.1} parent=1 // loop_footer_branch
      %12 = sbr.rel target = $region3
    $region8: #{tpu_custom_call.1} parent=1 // loop_exit
      _
    %275 = vsyncpa [#allocation3], 1
    %s276 = scalar_lea.sflag [#allocation3], 1
    %277 = vsyncpa %s276, 1
    %278 = vsyncpa [#allocation5], 1

</llo_original>
